<compile_context>
chip_gen: v5e
topology: v5e:2x2
jax: 0.10.0
libtpu: 0.0.40
codegen_flags: <defaults>
</compile_context>

<pallas_src>
import jax
import jax.numpy as jnp
from jax.experimental import pallas as pl
from jax.experimental.pallas import tpu as pltpu


def _round_up(a: int, b: int) -> int:
    return (a + b - 1) // b * b


def _prelu2d_kernel(s_ref, x_ref, o_ref):
    # s_ref: (row_block, 2)  column 0 = scale_left, column 1 = scale_right
    # x_ref, o_ref: (row_block, lane_block)
    s = s_ref[...]
    sl = s[:, 0:1]
    sr = s[:, 1:2]
    x = x_ref[...]
    o_ref[...] = x * jnp.where(x > 0, sr, sl)


def prelu2d(x, scale_left, scale_right, *,
            target_block_bytes=4 << 20, max_lane_block=8192):
    """Two-sided PReLU: where(X > 0, X * scale_right[c], X * scale_left[c]).

    x: (N, C, H, W); scale_left / scale_right: (C,). Returns (N, C, H, W).
    Matches the PyTorch module: scales are cast to X.dtype before multiply.
    """
    N, C, H, W = x.shape
    R, L = N * C, H * W
    dtype = x.dtype
    itemsize = jnp.dtype(dtype).itemsize

    # --- lane (last-dim) tiling: multiple of 128, capped at max_lane_block ---
    lane_block = min(_round_up(L, 128), max_lane_block)
    n_lane_blocks = pl.cdiv(L, lane_block)

    # --- row (second-minor) tiling: sized so one x block is ~4 MiB ----------
    row_gran = max(8, 32 // itemsize)          # 8 for f32, 16 for bf16 packing
    rows_target = max(
        row_gran,
        (target_block_bytes // (lane_block * itemsize)) // row_gran * row_gran)
    row_block = min(rows_target, _round_up(R, row_gran))
    n_row_blocks = pl.cdiv(R, row_block)

    # --- v7x megacore: avoid a degenerate (1, 1) grid on non-tiny tensors ---
    total_bytes = R * L * itemsize
    if n_row_blocks * n_lane_blocks == 1 and total_bytes > (2 << 20):
        if row_block >= 2 * row_gran:
            row_block = _round_up(pl.cdiv(row_block, 2), row_gran)
            n_row_blocks = pl.cdiv(R, row_block)
        elif lane_block >= 256:
            lane_block = _round_up(pl.cdiv(lane_block, 2), 128)
            n_lane_blocks = pl.cdiv(L, lane_block)

    # --- flatten x (free view); pad ONLY the tiny scale table ---------------
    x2 = x.reshape(R, L)

    # per-row scale table: row r <-> channel r % C (cast to x dtype, matching
    # the PyTorch module's `.to(X.dtype)` before the multiply)
    s = jnp.stack(
        [scale_left.astype(dtype), scale_right.astype(dtype)], axis=-1)  # (C,2)
    s = jnp.tile(s, (N, 1))                                              # (R,2)
    R_pad_rows = n_row_blocks * row_block
    if R_pad_rows != R:
        s = jnp.pad(s, ((0, R_pad_rows - R), (0, 0)))

    grid = (n_row_blocks, n_lane_blocks)

    # VMEM budget: double-buffered x + out blocks, double-buffered scale block
    # (lane-padded to 128), plus headroom.  ~18-20 MiB at 4 MiB blocks; under
    # the 32 MiB clamp and fine on v5e (raises its 16 MiB scoped default),
    # v6e (128 MiB physical) and v7x (64 MiB physical).
    block_bytes = row_block * lane_block * itemsize
    scale_block_bytes = row_block * 128 * itemsize
    vmem_need = 4 * block_bytes + 2 * scale_block_bytes + (2 << 20)
    vmem_limit = int(min(max(vmem_need, 8 << 20), 32 << 20))

    out2 = pl.pallas_call(
        _prelu2d_kernel,
        out_shape=jax.ShapeDtypeStruct((R, L), dtype),
        grid_spec=pltpu.PrefetchScalarGridSpec(
            num_scalar_prefetch=0,
            grid=grid,
            in_specs=[
                # scale block depends only on the outer (row) grid axis, so
                # its DMA is skipped across the inner lane axis.
                pl.BlockSpec((row_block, 2), lambda i, j: (i, 0)),
                pl.BlockSpec((row_block, lane_block), lambda i, j: (i, j)),
            ],
            out_specs=pl.BlockSpec((row_block, lane_block), lambda i, j: (i, j)),
        ),
        compiler_params=pltpu.CompilerParams(
            dimension_semantics=("parallel", "parallel"),
            vmem_limit_bytes=vmem_limit,
        ),
    )(s, x2)

    return out2.reshape(N, C, H, W)


if __name__ == "__main__":
    key = jax.random.PRNGKey(0)
    k_x, k_l, k_r = jax.random.split(key, 3)

    N, C, H, W = 2, 4, 16, 16              # width = C = 4
    x = jax.random.normal(k_x, (N, C, H, W), dtype=jnp.float32)
    scale_left = jax.random.normal(k_l, (C,), dtype=jnp.float32)
    scale_right = jax.random.normal(k_r, (C,), dtype=jnp.float32)

    out = prelu2d(x, scale_left, scale_right)
    out = jax.block_until_ready(out)

    # pure-JAX reference (matches the PyTorch module's two-sided PReLU)
    sl = scale_left.reshape(1, C, 1, 1)
    sr = scale_right.reshape(1, C, 1, 1)
    ref = jnp.where(x > 0, x * sr, x * sl)
    assert out.shape == (N, C, H, W)
    assert jnp.allclose(out, ref, atol=1e-6, rtol=1e-6)

    # also exercise a non-tile-aligned shape (R % 8 != 0, L % 128 != 0) to
    # validate the pad-free boundary-block path
    N2, C2, H2, W2 = 3, 5, 14, 14
    x2 = jax.random.normal(k_x, (N2, C2, H2, W2), dtype=jnp.float32)
    sl2 = jax.random.normal(k_l, (C2,), dtype=jnp.float32)
    sr2 = jax.random.normal(k_r, (C2,), dtype=jnp.float32)
    out2 = jax.block_until_ready(prelu2d(x2, sl2, sr2))
    ref2 = jnp.where(x2 > 0, x2 * sr2.reshape(1, C2, 1, 1),
                     x2 * sl2.reshape(1, C2, 1, 1))
    assert jnp.allclose(out2, ref2, atol=1e-6, rtol=1e-6)

    print("KERNEL_OK")
</pallas_src>

<mosaic_0001>
module attributes {stable_mosaic.version = 11 : i64} {
  func.func @_prelu2d_kernel(%arg0: i32, %arg1: i32, %arg2: memref<8x2xf32, #tpu.memory_space<vmem>>, %arg3: memref<8x256xf32, #tpu.memory_space<vmem>>, %arg4: memref<8x256xf32, #tpu.memory_space<vmem>>) attributes {dimension_semantics = [#tpu.dimension_semantics<parallel>, #tpu.dimension_semantics<parallel>], iteration_bounds = array<i64: 1, 1>, scalar_prefetch = 0 : i64, scratch_operands = 0 : i64, tpu.core_type = #tpu.core_type<tc>, window_params = [{transform_indices = @transform_0, window_bounds = array<i64: 8, 2>}, {transform_indices = @transform_1, window_bounds = array<i64: 8, 256>}, {transform_indices = @transform_2, window_bounds = array<i64: 8, 256>}]} {
    %c0 = arith.constant 0 : index
    %c0_0 = arith.constant 0 : index
    %0 = vector.load %arg2[%c0, %c0_0] : memref<8x2xf32, #tpu.memory_space<vmem>>, vector<8x2xf32>
    %1 = vector.extract_strided_slice %0 {offsets = [0, 0], sizes = [8, 1], strides = [1, 1]} : vector<8x2xf32> to vector<8x1xf32>
    %2 = vector.extract_strided_slice %0 {offsets = [0, 1], sizes = [8, 1], strides = [1, 1]} : vector<8x2xf32> to vector<8x1xf32>
    %c0_1 = arith.constant 0 : index
    %c0_2 = arith.constant 0 : index
    %3 = vector.load %arg3[%c0_1, %c0_2] : memref<8x256xf32, #tpu.memory_space<vmem>>, vector<8x256xf32>
    %cst = arith.constant 0.000000e+00 : f32
    %4 = vector.broadcast %cst : f32 to vector<8x256xf32>
    %5 = arith.cmpf ogt, %3, %4 : vector<8x256xf32>
    %6 = vector.shape_cast %2 : vector<8x1xf32> to vector<8x1xf32>
    %7 = vector.broadcast %6 : vector<8x1xf32> to vector<8x256xf32>
    %8 = vector.shape_cast %1 : vector<8x1xf32> to vector<8x1xf32>
    %9 = vector.broadcast %8 : vector<8x1xf32> to vector<8x256xf32>
    %10 = arith.select %5, %7, %9 : vector<8x256xi1>, vector<8x256xf32>
    %11 = arith.mulf %3, %10 : vector<8x256xf32>
    %c0_3 = arith.constant 0 : index
    %c0_4 = arith.constant 0 : index
    %12 = vector.load %arg4[%c0_3, %c0_4] : memref<8x256xf32, #tpu.memory_space<vmem>>, vector<8x256xf32>
    tpu.vector_store %arg4[%c0_3, %c0_4], %11 {strides = array<i32>} : memref<8x256xf32, #tpu.memory_space<vmem>>, vector<8x256xf32>,
    return
  }
  func.func @transform_0(%arg0: i32, %arg1: i32) -> (i32, i32) {
    %c0_i32 = arith.constant 0 : i32
    %c0_i32_0 = arith.constant 0 : i32
    return %arg0, %c0_i32 : i32, i32
  }
  func.func @transform_1(%arg0: i32, %arg1: i32) -> (i32, i32) {
    %c0_i32 = arith.constant 0 : i32
    return %arg0, %arg1 : i32, i32
  }
  func.func @transform_2(%arg0: i32, %arg1: i32) -> (i32, i32) {
    %c0_i32 = arith.constant 0 : i32
    return %arg0, %arg1 : i32, i32
  }
}

</mosaic_0001>

<llo_original>
// kernel: tpu_custom_call.1
$region0: #{tpu_custom_call.1}
  #allocation0 [shape = 'u32[]', space=smem, size = 0x4, offset = 0x4, fixed_abs, tag = 'smem constant byte address 0x4 - core index']
  #allocation1 [shape = 'u32[72,128]{1,0:T(1,128)}', space=vmem, size = 0x9000, scoped, tag = 'internal scratch']
  %s0 = inlined_call_operand.vmem [shape: f32[8,2], index: 0, kind: input, shape index: {}]
  %s1 = inlined_call_operand.hbm [shape: f32[8,256], index: 1, kind: input, shape index: {}]
  %s2 = inlined_call_operand.hbm [shape: f32[8,256], index: 2, kind: output, shape index: {}]
  %s3 = sld [smem:[#allocation0]]
  $region22: #{tpu_custom_call.1} parent=0
    _
  %s5 = ssub.s32 1, %s3
  %s6 = scalar_select 0, %s5, %s3
  $region1: #{tpu_custom_call.1} parent=0
    #allocation2 [shape = 'u8[8192]{0}', space=vmem, size = 0x2000, scoped, tag = 'input window, operand 1, single buffered']
    #allocation3 [shape = 's32[1]{0}', space=sflag, size = 0x4, scoped, tag = 'scoped memory for tpu_custom_call.1']
    #allocation4 [shape = 's32[1]{0}', space=sflag, size = 0x4, scoped, tag = 'scoped memory for tpu_custom_call.1']
    #allocation5 [shape = 'u8[8192]{0}', space=vmem, size = 0x2000, scoped, tag = 'output window, operand 0, single buffered']
    %7 = vsyncpa [#allocation3], 0
    %8 = vsyncpa [#allocation4], 0
    // Predicated region
    $region2: #{tpu_custom_call.1} parent=1 // pred_check
      _
    $region3: #{tpu_custom_call.1} parent=1 // pred_check_branch
      %10 = sbr.rel (0) target = $region5
    $region4: #{tpu_custom_call.1} parent=1 // pred_region
      _
    $region5: #{tpu_custom_call.1} parent=1 // pred_fallthru
      _
    // Predicated region
    $region6: #{tpu_custom_call.1} parent=1 // pred_check
      _
    $region7: #{tpu_custom_call.1} parent=1 // pred_check_branch
      %12 = sbr.rel (0) target = $region9
    $region8: #{tpu_custom_call.1} parent=1 // pred_region
      %14 = vsyncadd [#allocation3], 0
      %s16 = sshll.u32 %s1, 4
      %s17 = int_to_ptr.hbm [resolvable:$true] %s16
      %s18 = sshll.u32 [#allocation2], 4
      %s19 = int_to_ptr.vmem [resolvable:$true] %s18
      %21 = dma.hbm_to_vmem [thread:$0]  %s17, 256, %s19, [#allocation3]
    $region9: #{tpu_custom_call.1} parent=1 // pred_fallthru
      _
    // Predicated region
    $region10: #{tpu_custom_call.1} parent=1 // pred_check
      _
    $region11: #{tpu_custom_call.1} parent=1 // pred_check_branch
      %23 = sbr.rel (0) target = $region13
    $region12: #{tpu_custom_call.1} parent=1 // pred_region
      %25 = dma.done [#allocation3], 256
    $region13: #{tpu_custom_call.1} parent=1 // pred_fallthru
      _
    %v26 = vld [vmem:[%s0] sm:$0xff]
    %v27 = vld [vmem:[#allocation2] sm:$0xff]
    %v28 = vld [vmem:[#allocation2 + $0x8] sm:$0xff]
    %vm29 = vcmp.gt.f32.partialorder %v27, 0.0
    %vm30 = vcmp.gt.f32.partialorder %v28, 0.0
    %32 = vset.pattern.permute.xlu0 1
    %33 = vperm.xlu0 %32, %v26
    %v34 = vpop.permute.xlu0 %33
    %36 = vset.pattern.permute.xlu0 0
    %37 = vperm.xlu0 %36, %v26
    %v38 = vpop.permute.xlu0 %37
    %v40 = vsel %vm29, %v34, %v38
    %v41 = vsel %vm30, %v34, %v38
    %v42 = vmul.f32 %v27, %v40
    %v43 = vmul.f32 %v28, %v41
    %44 = vst [vmem:[#allocation5] sm:$0xff] %v42
    %45 = vst [vmem:[#allocation5 + $0x8] sm:$0xff] %v43
    // Predicated region
    $region14: #{tpu_custom_call.1} parent=1 // pred_check
      _
    $region15: #{tpu_custom_call.1} parent=1 // pred_check_branch
      %47 = sbr.rel (0) target = $region17
    $region16: #{tpu_custom_call.1} parent=1 // pred_region
      %49 = vsyncadd [#allocation4], 0
      %s51 = sshll.u32 [#allocation5], 4
      %s52 = int_to_ptr.vmem [resolvable:$true] %s51
      %s53 = sshll.u32 %s2, 4
      %s54 = int_to_ptr.hbm [resolvable:$true] %s53
      %56 = dma.vmem_to_hbm [thread:$0]  %s52, 256, %s54, [#allocation4]
    $region17: #{tpu_custom_call.1} parent=1 // pred_fallthru
      _
    // Predicated region
    $region18: #{tpu_custom_call.1} parent=1 // pred_check
      _
    $region19: #{tpu_custom_call.1} parent=1 // pred_check_branch
      %58 = sbr.rel (0) target = $region21
    $region20: #{tpu_custom_call.1} parent=1 // pred_region
      %60 = dma.done [#allocation4], 256
    $region21: #{tpu_custom_call.1} parent=1 // pred_fallthru
      _
    %61 = vsyncpa [#allocation3], 1
    %62 = vsyncpa [#allocation4], 1

</llo_original>
